<compile_context>
chip_gen: v7x
topology: tpu7x:2x2x1
jax: 0.10.0
libtpu: 0.0.40
codegen_flags: <defaults>
</compile_context>

<pallas_src>
import numpy as np
import jax
import jax.numpy as jnp
from jax import lax
from jax.experimental import pallas as pl
from jax.experimental.pallas import tpu as pltpu  # noqa: F401  (TPU backend)

KH = 3  # kernel height (fixed 3x3, stride 1, padding 1)
KW = 3  # kernel width


# ----------------------------------------------------------------------------
# Static selector turning the HWIO conv weight into a banded matmul matrix.
# S[wp, kw, w] = 1  iff  wp == w + kw   (padded column -> (tap, output column))
# ----------------------------------------------------------------------------
def _band_selector(W: int, Wp: int) -> np.ndarray:
    S = np.zeros((Wp, KW, W), dtype=np.float32)
    for w in range(W):
        for kw in range(KW):
            S[w + kw, kw, w] = 1.0
    return S


# ----------------------------------------------------------------------------
# Constant 0/1 matrices for per-channel reduce / broadcast along the folded
# (w*Cout + co) lane axis, so the kernel never needs lane shuffles:
#   y(1,WC) @ R  -> per-channel sums over w   (lanes 0..Cout-1)
#   v(1,WC) @ RT -> per-channel row tiled back over all w positions
# ----------------------------------------------------------------------------
def _channel_reduce_matrices(W: int, Cout: int):
    WC = W * Cout
    R = np.zeros((WC, WC), dtype=np.float32)
    R[:, :Cout] = np.tile(np.eye(Cout, dtype=np.float32), (W, 1))
    return R, R.T.copy()


# ----------------------------------------------------------------------------
# Fused kernel: conv matmul + global BN stats + scale/shift + ReLU.
# Single invocation (no grid) -- everything stays resident in VMEM.
# ----------------------------------------------------------------------------
def _fused_conv_bn_relu(lhs, wmat, r, rt, gamma_t, beta_t, *, count, eps):
    M, _ = lhs.shape
    WC = wmat.shape[1]
    inv_count = 1.0 / float(count)
    eps = float(eps)

    def kernel(lhs_ref, w_ref, r_ref, rt_ref, g_ref, b_ref, o_ref):
        # Conv as one MXU matmul: (N*H, 3*Wp*Cin) @ (3*Wp*Cin, W*Cout).
        acc = jnp.dot(lhs_ref[...], w_ref[...],
                      preferred_element_type=jnp.float32)            # (M, WC)

        # Global per-channel mean: sum over rows (n,h) then over w via R.
        col_s = jnp.sum(acc, axis=0, keepdims=True)                  # (1, WC)
        mean_c = jnp.dot(col_s, r_ref[...],
                         preferred_element_type=jnp.float32) * inv_count
        mean_t = jnp.dot(mean_c, rt_ref[...],
                         preferred_element_type=jnp.float32)         # tiled over w

        d = acc - mean_t

        # Two-pass (numerically safe) biased variance, training-mode BN.
        col_ss = jnp.sum(d * d, axis=0, keepdims=True)               # (1, WC)
        var_c = jnp.dot(col_ss, r_ref[...],
                        preferred_element_type=jnp.float32) * inv_count
        var_t = jnp.dot(var_c, rt_ref[...],
                        preferred_element_type=jnp.float32)          # tiled over w

        scale_t = g_ref[...] * lax.rsqrt(var_t + eps)                # EUP rsqrt
        o_ref[...] = jnp.maximum(d * scale_t + b_ref[...], 0.0)      # BN + ReLU

    return pl.pallas_call(
        kernel,
        out_shape=jax.ShapeDtypeStruct((M, WC), jnp.float32),
    )(lhs, wmat, r, rt, gamma_t, beta_t)


# ----------------------------------------------------------------------------
# Wrapper: full ConvBlock2D forward.  Input / output are NCHW like PyTorch.
# ----------------------------------------------------------------------------
def conv_block_2d(x_nchw, w_hwio, bias, gamma, beta, eps=1e-5):
    N, Cin, H, W = x_nchw.shape
    Cout = w_hwio.shape[-1]
    Hp, Wp = H + 2, W + 2
    WC = W * Cout

    # Layout plumbing on tiny tensors: NCHW -> padded NHWC with channels folded
    # into the lane dim, then an im2row slab so the conv is ONE matmul with the
    # batch folded into M and no sublane-offset slices inside the kernel.
    x_nhwc = jnp.transpose(x_nchw, (0, 2, 3, 1)).astype(jnp.float32)
    xp = jnp.pad(x_nhwc, ((0, 0), (1, 1), (1, 1), (0, 0)))
    xp_flat = xp.reshape(N, Hp, Wp * Cin)
    rows = jnp.concatenate([xp_flat[:, kh:kh + H, :] for kh in range(KH)],
                           axis=-1)                                   # (N,H,3*Wp*Cin)
    lhs = rows.reshape(N * H, KH * Wp * Cin)                          # (N*H, 216)

    # Banded weight matrix (in a real model: precompute once per weight update).
    S = jnp.asarray(_band_selector(W, Wp))
    wmat = jnp.einsum('pkw,hkio->hpiwo', S, w_hwio.astype(jnp.float32))
    wmat = wmat.reshape(KH * Wp * Cin, WC)                            # (216, 128)

    R_np, RT_np = _channel_reduce_matrices(W, Cout)
    r = jnp.asarray(R_np)
    rt = jnp.asarray(RT_np)

    gamma_t = jnp.tile(gamma.astype(jnp.float32), W).reshape(1, WC)
    beta_t = jnp.tile(beta.astype(jnp.float32), W).reshape(1, WC)

    # Conv bias is an exact no-op under training-mode BN (cancels in y - mean,
    # variance unchanged), so it is dropped from the fused kernel.
    del bias
    # TODO(synk): BatchNorm running_mean / running_var momentum updates (module
    # buffers, not part of the forward output) are not modeled.

    y = _fused_conv_bn_relu(lhs, wmat, r, rt, gamma_t, beta_t,
                            count=N * H * W, eps=eps)                 # (N*H, W*Cout)

    return y.reshape(N, H, W, Cout).transpose(0, 3, 1, 2)             # NCHW


# ----------------------------------------------------------------------------
# Pure-JAX reference (for validation).
# ----------------------------------------------------------------------------
def reference(x_nchw, w_hwio, bias, gamma, beta, eps=1e-5):
    x_nhwc = jnp.transpose(x_nchw, (0, 2, 3, 1)).astype(jnp.float32)
    y = lax.conv_general_dilated(
        x_nhwc, w_hwio, window_strides=(1, 1), padding=[(1, 1), (1, 1)],
        dimension_numbers=('NHWC', 'HWIO', 'NHWC'))
    y = y + bias.reshape(1, 1, 1, -1)
    mean = jnp.mean(y, axis=(0, 1, 2), keepdims=True)
    var = jnp.mean(jnp.square(y - mean), axis=(0, 1, 2), keepdims=True)
    y = (y - mean) * lax.rsqrt(var + eps)
    y = y * gamma.reshape(1, 1, 1, -1) + beta.reshape(1, 1, 1, -1)
    y = jnp.maximum(y, 0.0)
    return y.transpose(0, 3, 1, 2)


if __name__ == "__main__":
    N, Cin, Cout, H, W = 2, 4, 8, 16, 16

    key = jax.random.PRNGKey(0)
    kx, kw, kb = jax.random.split(key, 3)
    x = jax.random.normal(kx, (N, Cin, H, W), dtype=jnp.float32)
    # Conv weight directly in HWIO layout (PyTorch OIHW.transpose(2,3,1,0)).
    w_hwio = jax.random.normal(kw, (3, 3, Cin, Cout), dtype=jnp.float32) * 0.1
    bias = jax.random.normal(kb, (Cout,), dtype=jnp.float32) * 0.1
    gamma = jnp.ones((Cout,), jnp.float32)   # BatchNorm weight default
    beta = jnp.zeros((Cout,), jnp.float32)   # BatchNorm bias default

    fwd = jax.jit(conv_block_2d)
    y = jax.block_until_ready(fwd(x, w_hwio, bias, gamma, beta))

    y_ref = reference(x, w_hwio, bias, gamma, beta)
    np.testing.assert_allclose(np.asarray(y), np.asarray(y_ref),
                               rtol=1e-4, atol=1e-4)
    assert y.shape == (N, Cout, H, W)
    print("KERNEL_OK")
</pallas_src>

<mosaic_0001>
module attributes {stable_mosaic.version = 11 : i64} {
  func.func @kernel(%arg0: memref<32x216xf32, #tpu.memory_space<vmem>>, %arg1: memref<216x128xf32, #tpu.memory_space<vmem>>, %arg2: memref<128x128xf32, #tpu.memory_space<vmem>>, %arg3: memref<128x128xf32, #tpu.memory_space<vmem>>, %arg4: memref<1x128xf32, #tpu.memory_space<vmem>>, %arg5: memref<1x128xf32, #tpu.memory_space<vmem>>, %arg6: memref<32x128xf32, #tpu.memory_space<vmem>>) attributes {dimension_semantics = [], scalar_prefetch = 0 : i64, scratch_operands = 0 : i64, tpu.core_type = #tpu.core_type<tc>} {
    %c0 = arith.constant 0 : index
    %c0_0 = arith.constant 0 : index
    %0 = vector.load %arg0[%c0, %c0_0] : memref<32x216xf32, #tpu.memory_space<vmem>>, vector<32x216xf32>
    %c0_1 = arith.constant 0 : index
    %c0_2 = arith.constant 0 : index
    %1 = vector.load %arg1[%c0_1, %c0_2] : memref<216x128xf32, #tpu.memory_space<vmem>>, vector<216x128xf32>
    %cst = arith.constant dense<0.000000e+00> : vector<32x128xf32>
    %2 = tpu.matmul %0, %1, %cst {dimension_numbers = #tpu.dot_dimension_numbers<[1], [0], [0], [1], [0, 0, 1, 1], [], []>} : vector<32x216xf32>, vector<216x128xf32>, vector<32x128xf32> -> vector<32x128xf32>
    %cst_3 = arith.constant dense<0.000000e+00> : vector<128xf32>
    %3 = vector.multi_reduction <add>, %2, %cst_3 [0] : vector<32x128xf32> to vector<128xf32>
    %4 = vector.shape_cast %3 : vector<128xf32> to vector<1x128xf32>
    %c0_4 = arith.constant 0 : index
    %c0_5 = arith.constant 0 : index
    %5 = vector.load %arg2[%c0_4, %c0_5] : memref<128x128xf32, #tpu.memory_space<vmem>>, vector<128x128xf32>
    %cst_6 = arith.constant dense<0.000000e+00> : vector<1x128xf32>
    %6 = tpu.matmul %4, %5, %cst_6 {dimension_numbers = #tpu.dot_dimension_numbers<[1], [0], [0], [1], [0, 0, 1, 1], [], []>} : vector<1x128xf32>, vector<128x128xf32>, vector<1x128xf32> -> vector<1x128xf32>
    %cst_7 = arith.constant 0.001953125 : f32
    %7 = vector.broadcast %cst_7 : f32 to vector<1x128xf32>
    %8 = arith.mulf %6, %7 : vector<1x128xf32>
    %c0_8 = arith.constant 0 : index
    %c0_9 = arith.constant 0 : index
    %9 = vector.load %arg3[%c0_8, %c0_9] : memref<128x128xf32, #tpu.memory_space<vmem>>, vector<128x128xf32>
    %cst_10 = arith.constant dense<0.000000e+00> : vector<1x128xf32>
    %10 = tpu.matmul %8, %9, %cst_10 {dimension_numbers = #tpu.dot_dimension_numbers<[1], [0], [0], [1], [0, 0, 1, 1], [], []>} : vector<1x128xf32>, vector<128x128xf32>, vector<1x128xf32> -> vector<1x128xf32>
    %11 = vector.broadcast %10 : vector<1x128xf32> to vector<32x128xf32>
    %12 = arith.subf %2, %11 : vector<32x128xf32>
    %13 = arith.mulf %12, %12 : vector<32x128xf32>
    %cst_11 = arith.constant dense<0.000000e+00> : vector<128xf32>
    %14 = vector.multi_reduction <add>, %13, %cst_11 [0] : vector<32x128xf32> to vector<128xf32>
    %15 = vector.shape_cast %14 : vector<128xf32> to vector<1x128xf32>
    %c0_12 = arith.constant 0 : index
    %c0_13 = arith.constant 0 : index
    %16 = vector.load %arg2[%c0_12, %c0_13] : memref<128x128xf32, #tpu.memory_space<vmem>>, vector<128x128xf32>
    %cst_14 = arith.constant dense<0.000000e+00> : vector<1x128xf32>
    %17 = tpu.matmul %15, %16, %cst_14 {dimension_numbers = #tpu.dot_dimension_numbers<[1], [0], [0], [1], [0, 0, 1, 1], [], []>} : vector<1x128xf32>, vector<128x128xf32>, vector<1x128xf32> -> vector<1x128xf32>
    %cst_15 = arith.constant 0.001953125 : f32
    %18 = vector.broadcast %cst_15 : f32 to vector<1x128xf32>
    %19 = arith.mulf %17, %18 : vector<1x128xf32>
    %c0_16 = arith.constant 0 : index
    %c0_17 = arith.constant 0 : index
    %20 = vector.load %arg3[%c0_16, %c0_17] : memref<128x128xf32, #tpu.memory_space<vmem>>, vector<128x128xf32>
    %cst_18 = arith.constant dense<0.000000e+00> : vector<1x128xf32>
    %21 = tpu.matmul %19, %20, %cst_18 {dimension_numbers = #tpu.dot_dimension_numbers<[1], [0], [0], [1], [0, 0, 1, 1], [], []>} : vector<1x128xf32>, vector<128x128xf32>, vector<1x128xf32> -> vector<1x128xf32>
    %c0_19 = arith.constant 0 : index
    %c0_20 = arith.constant 0 : index
    %22 = vector.load %arg4[%c0_19, %c0_20] : memref<1x128xf32, #tpu.memory_space<vmem>>, vector<1x128xf32>
    %cst_21 = arith.constant 9.99999974E-6 : f32
    %23 = vector.broadcast %cst_21 : f32 to vector<1x128xf32>
    %24 = arith.addf %21, %23 : vector<1x128xf32>
    %25 = math.rsqrt %24 : vector<1x128xf32>
    %26 = arith.mulf %22, %25 : vector<1x128xf32>
    %27 = vector.broadcast %26 : vector<1x128xf32> to vector<32x128xf32>
    %28 = arith.mulf %12, %27 : vector<32x128xf32>
    %c0_22 = arith.constant 0 : index
    %c0_23 = arith.constant 0 : index
    %29 = vector.load %arg5[%c0_22, %c0_23] : memref<1x128xf32, #tpu.memory_space<vmem>>, vector<1x128xf32>
    %30 = vector.broadcast %29 : vector<1x128xf32> to vector<32x128xf32>
    %31 = arith.addf %28, %30 : vector<32x128xf32>
    %cst_24 = arith.constant 0.000000e+00 : f32
    %32 = vector.broadcast %cst_24 : f32 to vector<32x128xf32>
    %33 = arith.maximumf %31, %32 : vector<32x128xf32>
    %c0_25 = arith.constant 0 : index
    %c0_26 = arith.constant 0 : index
    %34 = vector.load %arg6[%c0_25, %c0_26] : memref<32x128xf32, #tpu.memory_space<vmem>>, vector<32x128xf32>
    tpu.vector_store %arg6[%c0_25, %c0_26], %33 {strides = array<i32>} : memref<32x128xf32, #tpu.memory_space<vmem>>, vector<32x128xf32>,
    return
  }
}

</mosaic_0001>

<llo_original>
// kernel: tile.13
$region0: #{tile.13}
  #allocation0 [shape = 's32[1]{0}', space=sflag, size = 0x4, scoped, tag = 'scoped memory for tile.13']
  %s0 = inlined_call_operand.vmem [shape: f32[8], index: 0, kind: input, shape index: {}]
  %s1 = inlined_call_operand.vmem [shape: f32[16,8], index: 1, kind: output, shape index: {}]
  // Predicated region
  $region2: #{tile.13} parent=0 // pred_check
    _
  $region3: #{tile.13} parent=0 // pred_check_branch
    %3 = sbr.rel (0) target = $region5
  $region4: #{tile.13} parent=0 // pred_region
    _
  $region5: #{tile.13} parent=0 // pred_fallthru
    _
  %v4 = vld [vmem:[%s0] ss:$0 sm:$0xff]
  %5 = vst [vmem:[%s1] sm:$0xff] %v4
  %s6 = scalar_lea.vmem %s1, 8
  %7 = vst [vmem:[%s6] sm:$0xff] %v4

// kernel: tile.14
$region0: #{tile.14}
  %s0 = inlined_call_operand.vmem [shape: f32[16,8], index: 0, kind: input, shape index: {}]
  %s1 = inlined_call_operand.vmem [shape: f32[1,128], index: 1, kind: output, shape index: {}]
  $region1: #{tile.14} parent=0
    #allocation0 [shape = 'u8[4096]{0}', space=vmem, size = 0x1000, scoped, tag = 'scoped mem for output reshape']
    %v2 = vld [vmem:[%s0] sm:$0x1]
    %vm3 = vcmask 64512
    %4 = vst.msk [vmem:[#allocation0] sm:$0x1] %vm3, %v2
    %s5 = scalar_lea.vmem %s0, 15
    %v6 = vld [vmem:[%s5] sm:$0x1]
    %7 = vrot.lane.b32.xlu0 %v6, 120
    %v8 = vpop.permute.xlu0 %7
    %vm9 = vcmask 1048512
    %10 = vst.msk [vmem:[#allocation0] sm:$0x1] %vm9, %v8
    %s11 = scalar_lea.vmem %s0, 14
    %v12 = vld [vmem:[%s11] sm:$0x1]
    %13 = vrot.lane.b32.xlu0 %v12, 112
    %v14 = vpop.permute.xlu0 %13
    %vm15 = vcmask 982912
    %16 = vst.msk [vmem:[#allocation0] sm:$0x1] %vm15, %v14
    %s17 = scalar_lea.vmem %s0, 13
    %v18 = vld [vmem:[%s17] sm:$0x1]
    %19 = vrot.lane.b32.xlu0 %v18, 104
    %v20 = vpop.permute.xlu0 %19
    %vm21 = vcmask 917312
    %22 = vst.msk [vmem:[#allocation0] sm:$0x1] %vm21, %v20
    %s23 = scalar_lea.vmem %s0, 12
    %v24 = vld [vmem:[%s23] sm:$0x1]
    %25 = vrot.lane.b32.xlu0 %v24, 96
    %v26 = vpop.permute.xlu0 %25
    %vm27 = vcmask 851712
    %28 = vst.msk [vmem:[#allocation0] sm:$0x1] %vm27, %v26
    %s29 = scalar_lea.vmem %s0, 11
    %v30 = vld [vmem:[%s29] sm:$0x1]
    %31 = vrot.lane.b32.xlu0 %v30, 88
    %v32 = vpop.permute.xlu0 %31
    %vm33 = vcmask 786112
    %34 = vst.msk [vmem:[#allocation0] sm:$0x1] %vm33, %v32
    %s35 = scalar_lea.vmem %s0, 10
    %v36 = vld [vmem:[%s35] sm:$0x1]
    %37 = vrot.lane.b32.xlu0 %v36, 80
    %v38 = vpop.permute.xlu0 %37
    %vm39 = vcmask 720512
    %40 = vst.msk [vmem:[#allocation0] sm:$0x1] %vm39, %v38
    %s41 = scalar_lea.vmem %s0, 9
    %v42 = vld [vmem:[%s41] sm:$0x1]
    %43 = vrot.lane.b32.xlu0 %v42, 72
    %v44 = vpop.permute.xlu0 %43
    %vm45 = vcmask 654912
    %46 = vst.msk [vmem:[#allocation0] sm:$0x1] %vm45, %v44
    %s47 = scalar_lea.vmem %s0, 8
    %v48 = vld [vmem:[%s47] sm:$0x1]
    %49 = vrot.lane.b32.xlu0 %v48, 64
    %v50 = vpop.permute.xlu0 %49
    %vm51 = vcmask 589312
    %52 = vst.msk [vmem:[#allocation0] sm:$0x1] %vm51, %v50
    %s53 = scalar_lea.vmem %s0, 7
    %v54 = vld [vmem:[%s53] sm:$0x1]
    %55 = vrot.lane.b32.xlu0 %v54, 56
    %v56 = vpop.permute.xlu0 %55
    %vm57 = vcmask 523712
    %58 = vst.msk [vmem:[#allocation0] sm:$0x1] %vm57, %v56
    %s59 = scalar_lea.vmem %s0, 6
    %v60 = vld [vmem:[%s59] sm:$0x1]
    %61 = vrot.lane.b32.xlu0 %v60, 48
    %v62 = vpop.permute.xlu0 %61
    %vm63 = vcmask 458112
    %64 = vst.msk [vmem:[#allocation0] sm:$0x1] %vm63, %v62
    %s65 = scalar_lea.vmem %s0, 5
    %v66 = vld [vmem:[%s65] sm:$0x1]
    %67 = vrot.lane.b32.xlu0 %v66, 40
    %v68 = vpop.permute.xlu0 %67
    %vm69 = vcmask 392512
    %70 = vst.msk [vmem:[#allocation0] sm:$0x1] %vm69, %v68
    %s71 = scalar_lea.vmem %s0, 4
    %v72 = vld [vmem:[%s71] sm:$0x1]
    %73 = vrot.lane.b32.xlu0 %v72, 32
    %v74 = vpop.permute.xlu0 %73
    %vm75 = vcmask 326912
    %76 = vst.msk [vmem:[#allocation0] sm:$0x1] %vm75, %v74
    %s77 = scalar_lea.vmem %s0, 3
    %v78 = vld [vmem:[%s77] sm:$0x1]
    %79 = vrot.lane.b32.xlu0 %v78, 24
    %v80 = vpop.permute.xlu0 %79
    %vm81 = vcmask 261312
    %82 = vst.msk [vmem:[#allocation0] sm:$0x1] %vm81, %v80
    %s83 = scalar_lea.vmem %s0, 2
    %v84 = vld [vmem:[%s83] sm:$0x1]
    %85 = vrot.lane.b32.xlu0 %v84, 16
    %v86 = vpop.permute.xlu0 %85
    %vm87 = vcmask 195712
    %88 = vst.msk [vmem:[#allocation0] sm:$0x1] %vm87, %v86
    %s89 = scalar_lea.vmem %s0, 1
    %v90 = vld [vmem:[%s89] sm:$0x1]
    %91 = vrot.lane.b32.xlu0 %v90, 8
    %v92 = vpop.permute.xlu0 %91
    %vm93 = vcmask 130112
    %94 = vst.msk [vmem:[#allocation0] sm:$0x1] %vm93, %v92
    %s96 = sshllo.u32 0, 1
    %v98 = vld [vmem:[#allocation0] sm:%s96]
    %s99 = sshllo.u32 0, 1
    %100 = vst [vmem:[%s1] sm:%s99] %v98

// kernel: conv_block_2d.1
$region0: #{conv_block_2d.1}
  #allocation0 [shape = 'u32[]', space=smem, size = 0x4, offset = 0x4, fixed_abs, tag = 'smem constant byte address 0x4 - core index']
  #allocation1 [shape = 'u32[144,128]{1,0:T(1,128)}', space=vmem, size = 0x12000, scoped, tag = 'internal scratch']
  %s0 = inlined_call_operand.vmem [shape: f32[32,216], index: 0, kind: input, shape index: {}]
  %s1 = inlined_call_operand.vmem [shape: f32[216,128], index: 1, kind: input, shape index: {}]
  %s2 = inlined_call_operand.vmem [shape: f32[128,128], index: 2, kind: input, shape index: {}]
  %s3 = inlined_call_operand.vmem [shape: f32[128,128], index: 3, kind: input, shape index: {}]
  %s4 = inlined_call_operand.vmem [shape: f32[1,128], index: 4, kind: input, shape index: {}]
  %s5 = inlined_call_operand.vmem [shape: f32[1,128], index: 5, kind: input, shape index: {}]
  %s6 = inlined_call_operand.vmem [shape: f32[32,128], index: 6, kind: output, shape index: {}]
  %s7 = sld [smem:[#allocation0]]
  $region34: #{conv_block_2d.1} parent=0
    _
  %s9 = ssub.s32 1, %s7
  %s10 = scalar_select 0, %s9, %s7
  // Predicated region
  $region2: #{conv_block_2d.1} parent=0 // pred_check
    _
  $region3: #{conv_block_2d.1} parent=0 // pred_check_branch
    %12 = sbr.rel (0) target = $region5
  $region4: #{conv_block_2d.1} parent=0 // pred_region
    _
  $region5: #{conv_block_2d.1} parent=0 // pred_fallthru
    _
  // Predicated region
  $region6: #{conv_block_2d.1} parent=0 // pred_check
    _
  $region7: #{conv_block_2d.1} parent=0 // pred_check_branch
    %14 = sbr.rel (0) target = $region9
  $region8: #{conv_block_2d.1} parent=0 // pred_region
    _
  $region9: #{conv_block_2d.1} parent=0 // pred_fallthru
    _
  // Predicated region
  $region10: #{conv_block_2d.1} parent=0 // pred_check
    _
  $region11: #{conv_block_2d.1} parent=0 // pred_check_branch
    %16 = sbr.rel (0) target = $region13
  $region12: #{conv_block_2d.1} parent=0 // pred_region
    _
  $region13: #{conv_block_2d.1} parent=0 // pred_fallthru
    _
  // Predicated region
  $region14: #{conv_block_2d.1} parent=0 // pred_check
    _
  $region15: #{conv_block_2d.1} parent=0 // pred_check_branch
    %18 = sbr.rel (0) target = $region17
  $region16: #{conv_block_2d.1} parent=0 // pred_region
    _
  $region17: #{conv_block_2d.1} parent=0 // pred_fallthru
    _
  // Predicated region
  $region18: #{conv_block_2d.1} parent=0 // pred_check
    _
  $region19: #{conv_block_2d.1} parent=0 // pred_check_branch
    %20 = sbr.rel (0) target = $region21
  $region20: #{conv_block_2d.1} parent=0 // pred_region
    _
  $region21: #{conv_block_2d.1} parent=0 // pred_fallthru
    _
  // Predicated region
  $region22: #{conv_block_2d.1} parent=0 // pred_check
    _
  $region23: #{conv_block_2d.1} parent=0 // pred_check_branch
    %22 = sbr.rel (0) target = $region25
  $region24: #{conv_block_2d.1} parent=0 // pred_region
    _
  $region25: #{conv_block_2d.1} parent=0 // pred_fallthru
    _
  %v23 = vld [vmem:[%s0] sm:$0xff]
  %v24 = vld [vmem:[%s0 + $0x8] sm:$0xff]
  %v25 = vld [vmem:[%s0 + $0x10] sm:$0xff]
  %v26 = vld [vmem:[%s0 + $0x18] sm:$0xff]
  %v27 = vld [vmem:[%s0 + $0x20] sm:$0xff]
  %v28 = vld [vmem:[%s0 + $0x28] sm:$0xff]
  %v29 = vld [vmem:[%s0 + $0x30] sm:$0xff]
  %v30 = vld [vmem:[%s0 + $0x38] sm:$0xff]
  %v31 = vld [vmem:[%s1] sm:$0xff]
  %v32 = vld [vmem:[%s1 + $0x8] sm:$0xff]
  %v33 = vld [vmem:[%s1 + $0x10] sm:$0xff]
  %v34 = vld [vmem:[%s1 + $0x18] sm:$0xff]
  %v35 = vld [vmem:[%s1 + $0x20] sm:$0xff]
  %v36 = vld [vmem:[%s1 + $0x28] sm:$0xff]
  %v37 = vld [vmem:[%s1 + $0x30] sm:$0xff]
  %v38 = vld [vmem:[%s1 + $0x38] sm:$0xff]
  %v39 = vld [vmem:[%s1 + $0x40] sm:$0xff]
  %v40 = vld [vmem:[%s1 + $0x48] sm:$0xff]
  %v41 = vld [vmem:[%s1 + $0x50] sm:$0xff]
  %v42 = vld [vmem:[%s1 + $0x58] sm:$0xff]
  %v43 = vld [vmem:[%s1 + $0x60] sm:$0xff]
  %v44 = vld [vmem:[%s1 + $0x68] sm:$0xff]
  %v45 = vld [vmem:[%s1 + $0x70] sm:$0xff]
  %v46 = vld [vmem:[%s1 + $0x78] sm:$0xff]
  %v47 = vld [vmem:[%s1 + $0x80] sm:$0xff]
  %v48 = vld [vmem:[%s1 + $0x88] sm:$0xff]
  %v49 = vld [vmem:[%s1 + $0x90] sm:$0xff]
  %v50 = vld [vmem:[%s1 + $0x98] sm:$0xff]
  %v51 = vld [vmem:[%s1 + $0xa0] sm:$0xff]
  %v52 = vld [vmem:[%s1 + $0xa8] sm:$0xff]
  %v53 = vld [vmem:[%s1 + $0xb0] sm:$0xff]
  %v54 = vld [vmem:[%s1 + $0xb8] sm:$0xff]
  %v55 = vld [vmem:[%s1 + $0xc0] sm:$0xff]
  %v56 = vld [vmem:[%s1 + $0xc8] sm:$0xff]
  %v57 = vld [vmem:[%s1 + $0xd0] sm:$0xff]
  %vm58 = vcmask 719872
  %v60 = vsel %vm58, %v24, 0
  %v63 = vsel %vm58, %v26, 0
  %v66 = vsel %vm58, %v28, 0
  %v69 = vsel %vm58, %v30, 0
  %71 = vmatprep.subr.mxu0 0.0
  %72 = vmatpush1.msra.mxu0 %v31
  %73 = vmatprep.subr.mxu0 0.0
  %74 = vmatpush1.msra.mxu0 %v32
  %75 = vmatprep.subr.mxu0 0.0
  %76 = vmatpush1.msra.mxu0 %v33
  %77 = vmatprep.subr.mxu0 0.0
  %78 = vmatpush1.msra.mxu0 %v34
  %79 = vmatprep.subr.mxu0 0.0
  %80 = vmatpush1.msra.mxu0 %v35
  %81 = vmatprep.subr.mxu0 0.0
  %82 = vmatpush1.msra.mxu0 %v36
  %83 = vmatprep.subr.mxu0 0.0
  %84 = vmatpush1.msra.mxu0 %v37
  %85 = vmatprep.subr.mxu0 0.0
  %86 = vmatpush1.msra.mxu0 %v38
  %87 = vmatprep.subr.mxu0 0.0
  %88 = vmatpush1.msra.mxu0 %v39
  %89 = vmatprep.subr.mxu0 0.0
  %90 = vmatpush1.msra.mxu0 %v40
  %91 = vmatprep.subr.mxu0 0.0
  %92 = vmatpush1.msra.mxu0 %v41
  %93 = vmatprep.subr.mxu0 0.0
  %94 = vmatpush1.msra.mxu0 %v42
  %95 = vmatprep.subr.mxu0 0.0
  %96 = vmatpush1.msra.mxu0 %v43
  %97 = vmatprep.subr.mxu0 0.0
  %98 = vmatpush1.msra.mxu0 %v44
  %99 = vmatprep.subr.mxu0 0.0
  %100 = vmatpush1.msra.mxu0 %v45
  %101 = vmatprep.subr.mxu0 0.0
  %102 = vmatpush1.msra.mxu0 %v46
  %103 = vmatprep.subr.mxu0 0.0
  %104 = vmatpush1.msra.mxu0 %v47
  %105 = vmatprep.subr.mxu0 0.0
  %106 = vmatpush1.msra.mxu0 %v48
  %107 = vmatprep.subr.mxu0 0.0
  %108 = vmatpush1.msra.mxu0 %v49
  %109 = vmatprep.subr.mxu0 0.0
  %110 = vmatpush1.msra.mxu0 %v50
  %111 = vmatprep.subr.mxu0 0.0
  %112 = vmatpush1.msra.mxu0 %v51
  %113 = vmatprep.subr.mxu0 0.0
  %114 = vmatpush1.msra.mxu0 %v52
  %115 = vmatprep.subr.mxu0 0.0
  %116 = vmatpush1.msra.mxu0 %v53
  %117 = vmatprep.subr.mxu0 0.0
  %118 = vmatpush1.msra.mxu0 %v54
  %119 = vmatprep.subr.mxu0 0.0
  %120 = vmatpush1.msra.mxu0 %v55
  %121 = vmatprep.subr.mxu0 0.0
  %122 = vmatpush1.msra.mxu0 %v56
  %123 = vmatprep.subr.mxu0 0.0
  %124 = vmatpush1.msra.mxu0 %v57
  %125 = vmatprep.subr.mxu0 0.0
  %126 = vmatpush1.msra.mxu0 0.0
  %127 = vmatprep.subr.mxu0 0.0
  %128 = vmatpush1.msra.mxu0 0.0
  %129 = vmatprep.subr.mxu0 0.0
  %130 = vmatpush1.msra.mxu0 0.0
  %131 = vmatprep.subr.mxu0 0.0
  %132 = vmatpush1.msra.mxu0 0.0
  %133 = vmatprep.subr.mxu0 0.0
  %134 = vmatpush1.msra.mxu0 0.0
  %135 = vmatprep.mubr.f32.mxu0 %v60
  %136 = vmatmul.mubr.f32.gmra.mrb[0].mxu0 %v23
  %v137 = vpop.f32.mrb[0].mxu0
  %v138 = vadd.f32 0.0, %v137
  %v139 = vpop.f32.mrb[0].mxu0
  %140 = vmatprep.mubr.f32.mxu0 %v63
  %141 = vmatmul.mubr.f32.gmra.mrb[0].mxu0 %v25
  %v142 = vpop.f32.mrb[0].mxu0
  %v143 = vadd.f32 0.0, %v142
  %v144 = vpop.f32.mrb[0].mxu0
  %145 = vmatprep.mubr.f32.mxu0 %v66
  %146 = vmatmul.mubr.f32.gmra.mrb[0].mxu0 %v27
  %v147 = vpop.f32.mrb[0].mxu0
  %v148 = vadd.f32 0.0, %v147
  %v149 = vpop.f32.mrb[0].mxu0
  %150 = vmatprep.mubr.f32.mxu0 %v69
  %151 = vmatmul.mubr.f32.gmra.mrb[0].mxu0 %v29
  %v152 = vpop.f32.mrb[0].mxu0
  %v153 = vadd.f32 0.0, %v152
  %v154 = vpop.f32.mrb[0].mxu0
  %155 = vdwg.mxu0
  %v156 = vadd.f32 %v138, %v143
  %v157 = vadd.f32 %v156, %v148
  %v158 = vadd.f32 %v157, %v153
  %v159 = vrot.slane %v158, 4
  %v160 = vadd.f32 %v158, %v159
  %v161 = vrot.slane %v160, 2
  %v162 = vadd.f32 %v160, %v161
  %v163 = vrot.slane %v162, 1
  %v164 = vadd.f32 %v162, %v163
  %v165 = vld [vmem:[%s2] sm:$0xff]
  %v166 = vld [vmem:[%s2 + $0x8] sm:$0xff]
  %v167 = vld [vmem:[%s2 + $0x10] sm:$0xff]
  %v168 = vld [vmem:[%s2 + $0x18] sm:$0xff]
  %v169 = vld [vmem:[%s2 + $0x20] sm:$0xff]
  %v170 = vld [vmem:[%s2 + $0x28] sm:$0xff]
  %v171 = vld [vmem:[%s2 + $0x30] sm:$0xff]
  %v172 = vld [vmem:[%s2 + $0x38] sm:$0xff]
  %v173 = vld [vmem:[%s2 + $0x40] sm:$0xff]
  %v174 = vld [vmem:[%s2 + $0x48] sm:$0xff]
  %v175 = vld [vmem:[%s2 + $0x50] sm:$0xff]
  %v176 = vld [vmem:[%s2 + $0x58] sm:$0xff]
  %v177 = vld [vmem:[%s2 + $0x60] sm:$0xff]
  %v178 = vld [vmem:[%s2 + $0x68] sm:$0xff]
  %v179 = vld [vmem:[%s2 + $0x70] sm:$0xff]
  %v180 = vld [vmem:[%s2 + $0x78] sm:$0xff]
  %181 = vmatprep.subr.mxu0 0.0
  %182 = vmatpush1.msra.mxu0 %v165
  %183 = vmatprep.subr.mxu0 0.0
  %184 = vmatpush1.msra.mxu0 %v166
  %185 = vmatprep.subr.mxu0 0.0
  %186 = vmatpush1.msra.mxu0 %v167
  %187 = vmatprep.subr.mxu0 0.0
  %188 = vmatpush1.msra.mxu0 %v168
  %189 = vmatprep.subr.mxu0 0.0
  %190 = vmatpush1.msra.mxu0 %v169
  %191 = vmatprep.subr.mxu0 0.0
  %192 = vmatpush1.msra.mxu0 %v170
  %193 = vmatprep.subr.mxu0 0.0
  %194 = vmatpush1.msra.mxu0 %v171
  %195 = vmatprep.subr.mxu0 0.0
  %196 = vmatpush1.msra.mxu0 %v172
  %197 = vmatprep.subr.mxu0 0.0
  %198 = vmatpush1.msra.mxu0 %v173
  %199 = vmatprep.subr.mxu0 0.0
  %200 = vmatpush1.msra.mxu0 %v174
  %201 = vmatprep.subr.mxu0 0.0
  %202 = vmatpush1.msra.mxu0 %v175
  %203 = vmatprep.subr.mxu0 0.0
  %204 = vmatpush1.msra.mxu0 %v176
  %205 = vmatprep.subr.mxu0 0.0
  %206 = vmatpush1.msra.mxu0 %v177
  %207 = vmatprep.subr.mxu0 0.0
  %208 = vmatpush1.msra.mxu0 %v178
  %209 = vmatprep.subr.mxu0 0.0
  %210 = vmatpush1.msra.mxu0 %v179
  %211 = vmatprep.subr.mxu0 0.0
  %212 = vmatpush1.msra.mxu0 %v180
  %213 = vmatprep.subr.mxu0 0.0
  %214 = vmatpush1.msra.mxu0 0.0
  %215 = vmatprep.subr.mxu0 0.0
  %216 = vmatpush1.msra.mxu0 0.0
  %217 = vmatprep.subr.mxu0 0.0
  %218 = vmatpush1.msra.mxu0 0.0
  %219 = vmatprep.subr.mxu0 0.0
  %220 = vmatpush1.msra.mxu0 0.0
  %221 = vmatprep.subr.mxu0 0.0
  %222 = vmatpush1.msra.mxu0 0.0
  %223 = vmatprep.subr.mxu0 0.0
  %224 = vmatpush1.msra.mxu0 0.0
  %225 = vmatprep.subr.mxu0 0.0
  %226 = vmatpush1.msra.mxu0 0.0
  %227 = vmatprep.subr.mxu0 0.0
  %228 = vmatpush1.msra.mxu0 0.0
  %229 = vmatprep.subr.mxu0 0.0
  %230 = vmatpush1.msra.mxu0 0.0
  %231 = vmatprep.subr.mxu0 0.0
  %232 = vmatpush1.msra.mxu0 0.0
  %233 = vmatprep.subr.mxu0 0.0
  %234 = vmatpush1.msra.mxu0 0.0
  %235 = vmatprep.subr.mxu0 0.0
  %236 = vmatpush1.msra.mxu0 0.0
  %237 = vmatprep.subr.mxu0 0.0
  %238 = vmatpush1.msra.mxu0 0.0
  %239 = vmatprep.subr.mxu0 0.0
  %240 = vmatpush1.msra.mxu0 0.0
  %241 = vmatprep.subr.mxu0 0.0
  %242 = vmatpush1.msra.mxu0 0.0
  %243 = vmatprep.subr.mxu0 0.0
  %244 = vmatpush1.msra.mxu0 0.0
  %245 = vmatprep.mubr.f32.mxu0 0.0
  %246 = vmatmul.mubr.f32.gmra.mrb[0].mxu0 %v164
  %v247 = vpop.f32.mrb[0].mxu0
  %v248 = vadd.f32 0.0, %v247
  %v249 = vpop.f32.mrb[0].mxu0
  %250 = vdwg.mxu0
  %v251 = vmul.f32 %v248, 0.001953125
  %v252 = vld [vmem:[%s3] sm:$0xff]
  %v253 = vld [vmem:[%s3 + $0x8] sm:$0xff]
  %v254 = vld [vmem:[%s3 + $0x10] sm:$0xff]
  %v255 = vld [vmem:[%s3 + $0x18] sm:$0xff]
  %v256 = vld [vmem:[%s3 + $0x20] sm:$0xff]
  %v257 = vld [vmem:[%s3 + $0x28] sm:$0xff]
  %v258 = vld [vmem:[%s3 + $0x30] sm:$0xff]
  %v259 = vld [vmem:[%s3 + $0x38] sm:$0xff]
  %v260 = vld [vmem:[%s3 + $0x40] sm:$0xff]
  %v261 = vld [vmem:[%s3 + $0x48] sm:$0xff]
  %v262 = vld [vmem:[%s3 + $0x50] sm:$0xff]
  %v263 = vld [vmem:[%s3 + $0x58] sm:$0xff]
  %v264 = vld [vmem:[%s3 + $0x60] sm:$0xff]
  %v265 = vld [vmem:[%s3 + $0x68] sm:$0xff]
  %v266 = vld [vmem:[%s3 + $0x70] sm:$0xff]
  %v267 = vld [vmem:[%s3 + $0x78] sm:$0xff]
  %268 = vmatprep.subr.mxu0 0.0
  %269 = vmatpush1.msra.mxu0 %v252
  %270 = vmatprep.subr.mxu0 0.0
  %271 = vmatpush1.msra.mxu0 %v253
  %272 = vmatprep.subr.mxu0 0.0
  %273 = vmatpush1.msra.mxu0 %v254
  %274 = vmatprep.subr.mxu0 0.0
  %275 = vmatpush1.msra.mxu0 %v255
  %276 = vmatprep.subr.mxu0 0.0
  %277 = vmatpush1.msra.mxu0 %v256
  %278 = vmatprep.subr.mxu0 0.0
  %279 = vmatpush1.msra.mxu0 %v257
  %280 = vmatprep.subr.mxu0 0.0
  %281 = vmatpush1.msra.mxu0 %v258
  %282 = vmatprep.subr.mxu0 0.0
  %283 = vmatpush1.msra.mxu0 %v259
  %284 = vmatprep.subr.mxu0 0.0
  %285 = vmatpush1.msra.mxu0 %v260
  %286 = vmatprep.subr.mxu0 0.0
  %287 = vmatpush1.msra.mxu0 %v261
  %288 = vmatprep.subr.mxu0 0.0
  %289 = vmatpush1.msra.mxu0 %v262
  %290 = vmatprep.subr.mxu0 0.0
  %291 = vmatpush1.msra.mxu0 %v263
  %292 = vmatprep.subr.mxu0 0.0
  %293 = vmatpush1.msra.mxu0 %v264
  %294 = vmatprep.subr.mxu0 0.0
  %295 = vmatpush1.msra.mxu0 %v265
  %296 = vmatprep.subr.mxu0 0.0
  %297 = vmatpush1.msra.mxu0 %v266
  %298 = vmatprep.subr.mxu0 0.0
  %299 = vmatpush1.msra.mxu0 %v267
  %300 = vmatprep.subr.mxu0 0.0
  %301 = vmatpush1.msra.mxu0 0.0
  %302 = vmatprep.subr.mxu0 0.0
  %303 = vmatpush1.msra.mxu0 0.0
  %304 = vmatprep.subr.mxu0 0.0
  %305 = vmatpush1.msra.mxu0 0.0
  %306 = vmatprep.subr.mxu0 0.0
  %307 = vmatpush1.msra.mxu0 0.0
  %308 = vmatprep.subr.mxu0 0.0
  %309 = vmatpush1.msra.mxu0 0.0
  %310 = vmatprep.subr.mxu0 0.0
  %311 = vmatpush1.msra.mxu0 0.0
  %312 = vmatprep.subr.mxu0 0.0
  %313 = vmatpush1.msra.mxu0 0.0
  %314 = vmatprep.subr.mxu0 0.0
  %315 = vmatpush1.msra.mxu0 0.0
  %316 = vmatprep.subr.mxu0 0.0
  %317 = vmatpush1.msra.mxu0 0.0
  %318 = vmatprep.subr.mxu0 0.0
  %319 = vmatpush1.msra.mxu0 0.0
  %320 = vmatprep.subr.mxu0 0.0
  %321 = vmatpush1.msra.mxu0 0.0
  %322 = vmatprep.subr.mxu0 0.0
  %323 = vmatpush1.msra.mxu0 0.0
  %324 = vmatprep.subr.mxu0 0.0
  %325 = vmatpush1.msra.mxu0 0.0
  %326 = vmatprep.subr.mxu0 0.0
  %327 = vmatpush1.msra.mxu0 0.0
  %328 = vmatprep.subr.mxu0 0.0
  %329 = vmatpush1.msra.mxu0 0.0
  %330 = vmatprep.subr.mxu0 0.0
  %331 = vmatpush1.msra.mxu0 0.0
  %332 = vmatprep.mubr.f32.mxu0 0.0
  %333 = vmatmul.mubr.f32.gmra.mrb[0].mxu0 %v251
  %v334 = vpop.f32.mrb[0].mxu0
  %v335 = vadd.f32 0.0, %v334
  %v336 = vpop.f32.mrb[0].mxu0
  %337 = vdwg.mxu0
  %v338 = vlaneseq
  %v339 = vshrl.u32 %v338, 7
  %v340 = vsub.s32 0, %v339
  %v341 = vrot.slane %v335, %v340
  %v342 = vsub.f32 %v138, %v341
  %v343 = vsub.f32 %v143, %v341
  %v344 = vsub.f32 %v148, %v341
  %v345 = vsub.f32 %v153, %v341
  %v346 = vmul.f32 %v342, %v342
  %v347 = vmul.f32 %v343, %v343
  %v348 = vmul.f32 %v344, %v344
  %v349 = vmul.f32 %v345, %v345
  %v350 = vadd.f32 %v346, %v347
  %v351 = vadd.f32 %v350, %v348
  %v352 = vadd.f32 %v351, %v349
  %v353 = vrot.slane %v352, 4
  %v354 = vadd.f32 %v352, %v353
  %v355 = vrot.slane %v354, 2
  %v356 = vadd.f32 %v354, %v355
  %v357 = vrot.slane %v356, 1
  %v358 = vadd.f32 %v356, %v357
  %359 = vmatprep.subr.mxu0 0.0
  %360 = vmatpush1.msra.mxu0 %v165
  %361 = vmatprep.subr.mxu0 0.0
  %362 = vmatpush1.msra.mxu0 %v166
  %363 = vmatprep.subr.mxu0 0.0
  %364 = vmatpush1.msra.mxu0 %v167
  %365 = vmatprep.subr.mxu0 0.0
  %366 = vmatpush1.msra.mxu0 %v168
  %367 = vmatprep.subr.mxu0 0.0
  %368 = vmatpush1.msra.mxu0 %v169
  %369 = vmatprep.subr.mxu0 0.0
  %370 = vmatpush1.msra.mxu0 %v170
  %371 = vmatprep.subr.mxu0 0.0
  %372 = vmatpush1.msra.mxu0 %v171
  %373 = vmatprep.subr.mxu0 0.0
  %374 = vmatpush1.msra.mxu0 %v172
  %375 = vmatprep.subr.mxu0 0.0
  %376 = vmatpush1.msra.mxu0 %v173
  %377 = vmatprep.subr.mxu0 0.0
  %378 = vmatpush1.msra.mxu0 %v174
  %379 = vmatprep.subr.mxu0 0.0
  %380 = vmatpush1.msra.mxu0 %v175
  %381 = vmatprep.subr.mxu0 0.0
  %382 = vmatpush1.msra.mxu0 %v176
  %383 = vmatprep.subr.mxu0 0.0
  %384 = vmatpush1.msra.mxu0 %v177
  %385 = vmatprep.subr.mxu0 0.0
  %386 = vmatpush1.msra.mxu0 %v178
  %387 = vmatprep.subr.mxu0 0.0
  %388 = vmatpush1.msra.mxu0 %v179
  %389 = vmatprep.subr.mxu0 0.0
  %390 = vmatpush1.msra.mxu0 %v180
  %391 = vmatprep.subr.mxu0 0.0
  %392 = vmatpush1.msra.mxu0 0.0
  %393 = vmatprep.subr.mxu0 0.0
  %394 = vmatpush1.msra.mxu0 0.0
  %395 = vmatprep.subr.mxu0 0.0
  %396 = vmatpush1.msra.mxu0 0.0
  %397 = vmatprep.subr.mxu0 0.0
  %398 = vmatpush1.msra.mxu0 0.0
  %399 = vmatprep.subr.mxu0 0.0
  %400 = vmatpush1.msra.mxu0 0.0
  %401 = vmatprep.subr.mxu0 0.0
  %402 = vmatpush1.msra.mxu0 0.0
  %403 = vmatprep.subr.mxu0 0.0
  %404 = vmatpush1.msra.mxu0 0.0
  %405 = vmatprep.subr.mxu0 0.0
  %406 = vmatpush1.msra.mxu0 0.0
  %407 = vmatprep.subr.mxu0 0.0
  %408 = vmatpush1.msra.mxu0 0.0
  %409 = vmatprep.subr.mxu0 0.0
  %410 = vmatpush1.msra.mxu0 0.0
  %411 = vmatprep.subr.mxu0 0.0
  %412 = vmatpush1.msra.mxu0 0.0
  %413 = vmatprep.subr.mxu0 0.0
  %414 = vmatpush1.msra.mxu0 0.0
  %415 = vmatprep.subr.mxu0 0.0
  %416 = vmatpush1.msra.mxu0 0.0
  %417 = vmatprep.subr.mxu0 0.0
  %418 = vmatpush1.msra.mxu0 0.0
  %419 = vmatprep.subr.mxu0 0.0
  %420 = vmatpush1.msra.mxu0 0.0
  %421 = vmatprep.subr.mxu0 0.0
  %422 = vmatpush1.msra.mxu0 0.0
  %423 = vmatprep.mubr.f32.mxu0 0.0
  %424 = vmatmul.mubr.f32.gmra.mrb[0].mxu0 %v358
  %v425 = vpop.f32.mrb[0].mxu0
  %v426 = vadd.f32 0.0, %v425
  %v427 = vpop.f32.mrb[0].mxu0
  %428 = vdwg.mxu0
  %v429 = vmul.f32 %v426, 0.001953125
  %v430 = vld [vmem:[%s4] sm:$0x1]
  %431 = vmatprep.subr.mxu0 0.0
  %432 = vmatpush1.msra.mxu0 %v252
  %433 = vmatprep.subr.mxu0 0.0
  %434 = vmatpush1.msra.mxu0 %v253
  %435 = vmatprep.subr.mxu0 0.0
  %436 = vmatpush1.msra.mxu0 %v254
  %437 = vmatprep.subr.mxu0 0.0
  %438 = vmatpush1.msra.mxu0 %v255
  %439 = vmatprep.subr.mxu0 0.0
  %440 = vmatpush1.msra.mxu0 %v256
  %441 = vmatprep.subr.mxu0 0.0
  %442 = vmatpush1.msra.mxu0 %v257
  %443 = vmatprep.subr.mxu0 0.0
  %444 = vmatpush1.msra.mxu0 %v258
  %445 = vmatprep.subr.mxu0 0.0
  %446 = vmatpush1.msra.mxu0 %v259
  %447 = vmatprep.subr.mxu0 0.0
  %448 = vmatpush1.msra.mxu0 %v260
  %449 = vmatprep.subr.mxu0 0.0
  %450 = vmatpush1.msra.mxu0 %v261
  %451 = vmatprep.subr.mxu0 0.0
  %452 = vmatpush1.msra.mxu0 %v262
  %453 = vmatprep.subr.mxu0 0.0
  %454 = vmatpush1.msra.mxu0 %v263
  %455 = vmatprep.subr.mxu0 0.0
  %456 = vmatpush1.msra.mxu0 %v264
  %457 = vmatprep.subr.mxu0 0.0
  %458 = vmatpush1.msra.mxu0 %v265
  %459 = vmatprep.subr.mxu0 0.0
  %460 = vmatpush1.msra.mxu0 %v266
  %461 = vmatprep.subr.mxu0 0.0
  %462 = vmatpush1.msra.mxu0 %v267
  %463 = vmatprep.subr.mxu0 0.0
  %464 = vmatpush1.msra.mxu0 0.0
  %465 = vmatprep.subr.mxu0 0.0
  %466 = vmatpush1.msra.mxu0 0.0
  %467 = vmatprep.subr.mxu0 0.0
  %468 = vmatpush1.msra.mxu0 0.0
  %469 = vmatprep.subr.mxu0 0.0
  %470 = vmatpush1.msra.mxu0 0.0
  %471 = vmatprep.subr.mxu0 0.0
  %472 = vmatpush1.msra.mxu0 0.0
  %473 = vmatprep.subr.mxu0 0.0
  %474 = vmatpush1.msra.mxu0 0.0
  %475 = vmatprep.subr.mxu0 0.0
  %476 = vmatpush1.msra.mxu0 0.0
  %477 = vmatprep.subr.mxu0 0.0
  %478 = vmatpush1.msra.mxu0 0.0
  %479 = vmatprep.subr.mxu0 0.0
  %480 = vmatpush1.msra.mxu0 0.0
  %481 = vmatprep.subr.mxu0 0.0
  %482 = vmatpush1.msra.mxu0 0.0
  %483 = vmatprep.subr.mxu0 0.0
  %484 = vmatpush1.msra.mxu0 0.0
  %485 = vmatprep.subr.mxu0 0.0
  %486 = vmatpush1.msra.mxu0 0.0
  %487 = vmatprep.subr.mxu0 0.0
  %488 = vmatpush1.msra.mxu0 0.0
  %489 = vmatprep.subr.mxu0 0.0
  %490 = vmatpush1.msra.mxu0 0.0
  %491 = vmatprep.subr.mxu0 0.0
  %492 = vmatpush1.msra.mxu0 0.0
  %493 = vmatprep.subr.mxu0 0.0
  %494 = vmatpush1.msra.mxu0 0.0
  %495 = vmatprep.mubr.f32.mxu0 0.0
  %496 = vmatmul.mubr.f32.gmra.mrb[0].mxu0 %v429
  %v497 = vpop.f32.mrb[0].mxu0
  %v498 = vadd.f32 1e-05, %v497
  %v499 = vpop.f32.mrb[0].mxu0
  %500 = vdwg.mxu0
  %v501 = vrsqrt.pop %v498
  %v502 = vmul.f32 %v430, %v501
  %v504 = vlaneseq
  %v505 = vshrl.u32 %v504, 7
  %v506 = vsub.s32 0, %v505
  %v507 = vrot.slane %v502, %v506
  %v509 = vmul.f32 %v342, %v507
  %v510 = vmul.f32 %v343, %v507
  %v511 = vmul.f32 %v344, %v507
  %v512 = vmul.f32 %v345, %v507
  %v513 = vld [vmem:[%s5] sm:$0x1]
  %v515 = vlaneseq
  %v516 = vshrl.u32 %v515, 7
  %v517 = vsub.s32 0, %v516
  %v518 = vrot.slane %v513, %v517
  %v520 = vadd.f32 %v509, %v518
  %v521 = vadd.f32 %v510, %v518
  %v522 = vadd.f32 %v511, %v518
  %v523 = vadd.f32 %v512, %v518
  %v524 = vmax.f32 %v520, 0.0
  %v525 = vmax.f32 %v521, 0.0
  %v526 = vmax.f32 %v522, 0.0
  %v527 = vmax.f32 %v523, 0.0
  %528 = vst [vmem:[%s6] sm:$0xff] %v524
  %529 = vst [vmem:[%s6 + $0x8] sm:$0xff] %v525
  %530 = vst [vmem:[%s6 + $0x10] sm:$0xff] %v526
  %531 = vst [vmem:[%s6 + $0x18] sm:$0xff] %v527
  // Predicated region
  $region26: #{conv_block_2d.1} parent=0 // pred_check
    _
  $region27: #{conv_block_2d.1} parent=0 // pred_check_branch
    %533 = sbr.rel (0) target = $region29
  $region28: #{conv_block_2d.1} parent=0 // pred_region
    _
  $region29: #{conv_block_2d.1} parent=0 // pred_fallthru
    _
  // Predicated region
  $region30: #{conv_block_2d.1} parent=0 // pred_check
    _
  $region31: #{conv_block_2d.1} parent=0 // pred_check_branch
    %535 = sbr.rel (0) target = $region33
  $region32: #{conv_block_2d.1} parent=0 // pred_region
    _
  $region33: #{conv_block_2d.1} parent=0 // pred_fallthru
    _

</llo_original>
